<compile_context>
chip_gen: v5e
topology: v5e:2x2
jax: 0.10.0
libtpu: 0.0.40
codegen_flags: <defaults>
</compile_context>

<pallas_src>
import functools

import jax
import jax.numpy as jnp
from jax.experimental import pallas as pl
from jax.experimental.pallas import tpu as pltpu

SUBLANE = 8  # f32 sublane packing: batch tiles are kept multiples of this


def _round_up(n, m):
    return ((n + m - 1) // m) * m


def _cdiv(a, b):
    return (a + b - 1) // b


def mlp_kernel(x_ref, w1_ref, b1_ref, w2_ref, b2_ref, o_ref):
    """One batch tile of: relu(x @ w1 + b1) @ w2 + b2."""
    # Cast activations to the MXU operand dtype inside the kernel (hidden
    # under the input DMA); accumulate in f32; bias + ReLU in f32 on the VPU.
    x = x_ref[...].astype(w1_ref.dtype)
    h = jnp.dot(x, w1_ref[...], preferred_element_type=jnp.float32)
    h = jnp.maximum(h + b1_ref[...], 0.0)
    y = jnp.dot(h.astype(w2_ref.dtype), w2_ref[...],
                preferred_element_type=jnp.float32)
    o_ref[...] = (y + b2_ref[...]).astype(o_ref.dtype)


def prepare_params(w1, b1, w2, b2, compute_dtype=jnp.bfloat16):
    """One-time parameter prep (hoisted out of the per-call forward):
       cast weights to the MXU operand dtype, biases to f32 row vectors.
       w1: (in, hid), b1: (hid,), w2: (hid, out), b2: (out,)."""
    return (jnp.asarray(w1, compute_dtype),
            jnp.asarray(b1, jnp.float32).reshape(1, -1),
            jnp.asarray(w2, compute_dtype),
            jnp.asarray(b2, jnp.float32).reshape(1, -1))


def _fused_xla_forward(x, w1, b1, w2, b2):
    """Same math as mlp_kernel, as a plain XLA fusion (tiny-batch fast path)."""
    h = jnp.dot(x.astype(w1.dtype), w1, preferred_element_type=jnp.float32) + b1
    h = jnp.maximum(h, 0.0)
    y = jnp.dot(h.astype(w2.dtype), w2, preferred_element_type=jnp.float32) + b2
    return y.astype(x.dtype)


@functools.partial(jax.jit, static_argnames=("tile_b", "min_pallas_batch"))
def simple_nn_forward(x, w1, b1, w2, b2, *, tile_b=2048, min_pallas_batch=256):
    """Forward pass of SimpleNN.

    Args:
      x : (B, input_size), float; output keeps x.dtype.
      w1: (input_size, hidden)  bf16 (from prepare_params).
      b1: (1, hidden)           f32.
      w2: (hidden, output)      bf16.
      b2: (1, output)           f32.
    """
    B, d_in = x.shape
    d_hid = w1.shape[1]
    d_out = w2.shape[1]

    # Fast path: for tiny batches the pallas_call launch / per-step overhead
    # dominates; a plain XLA fusion of the same math is as fast or faster.
    if B < min_pallas_batch:
        return _fused_xla_forward(x, w1, b1, w2, b2)

    # Batch tile: a multiple of 8 sublanes, capped so the grid has >=2 steps
    # (lets dimension_semantics=("parallel",) shard across v7x's 2 TCs; on
    # v5e/v6e the extra step only costs ~0.35 us).
    tb = max(SUBLANE, min(tile_b, _round_up(_cdiv(B, 2), SUBLANE)))
    grid = (_cdiv(B, tb),)  # partial last block is masked on store

    return pl.pallas_call(
        mlp_kernel,
        out_shape=jax.ShapeDtypeStruct((B, d_out), x.dtype),
        grid=grid,
        in_specs=[
            # Batch-tiled activations: streamed / double-buffered, unpadded.
            # (tb is a multiple of 8; d_in is the full array dim -> (8,128)
            # BlockSpec rule satisfied.)
            pl.BlockSpec((tb, d_in), lambda i: (i, 0)),
            # Weights & biases: full-extent blocks with constant index_map ->
            # VMEM-resident across grid steps, DMA'd once.
            pl.BlockSpec((d_in, d_hid), lambda i: (0, 0)),
            pl.BlockSpec((1, d_hid), lambda i: (0, 0)),
            pl.BlockSpec((d_hid, d_out), lambda i: (0, 0)),
            pl.BlockSpec((1, d_out), lambda i: (0, 0)),
        ],
        out_specs=pl.BlockSpec((tb, d_out), lambda i: (i, 0)),
        compiler_params=pltpu.CompilerParams(
            # Batch axis is embarrassingly parallel -> v7x 2-TC sharding.
            # Default scoped VMEM (32 MiB) is ample: footprint is ~few 100 KiB.
            dimension_semantics=("parallel",),
        ),
    )(x, w1, b1, w2, b2)


def init_linear_params(key, in_features, out_features, dtype=jnp.float32):
    """PyTorch-style Linear init: U(-1/sqrt(fan_in), 1/sqrt(fan_in)).
       Weight returned pre-transposed to (in, out); bias shape (out,)."""
    k_w, k_b = jax.random.split(key)
    bound = 1.0 / jnp.sqrt(jnp.float32(in_features))
    w = jax.random.uniform(k_w, (in_features, out_features), dtype,
                           minval=-bound, maxval=bound)
    b = jax.random.uniform(k_b, (out_features,), dtype,
                           minval=-bound, maxval=bound)
    return w, b


def _ref_forward_bf16(x, w1, b1, w2, b2, compute_dtype=jnp.bfloat16):
    """Plain-JAX reference mirroring the kernel's mixed-precision math."""
    xb = x.astype(compute_dtype)
    h = jnp.dot(xb, w1.astype(compute_dtype),
                preferred_element_type=jnp.float32) + b1.astype(jnp.float32)
    h = jnp.maximum(h, 0.0)
    y = jnp.dot(h.astype(compute_dtype), w2.astype(compute_dtype),
                preferred_element_type=jnp.float32) + b2.astype(jnp.float32)
    return y.astype(x.dtype)


# TODO(synk): SimpleNN.save/load (torch.save/torch.load checkpoint I/O) and the
# optimizer/DataLoader machinery have no kernel equivalent; only forward() is
# implemented here.

if __name__ == "__main__":
    # Small shapes consistent with the module: batch=8, in=32, hidden=64, out=16.
    batch, input_size, hidden_size, output_size = 8, 32, 64, 16

    key = jax.random.PRNGKey(0)
    k_x, k_fc1, k_fc2, k_big = jax.random.split(key, 4)

    x = jax.random.normal(k_x, (batch, input_size), jnp.float32)
    w1, b1 = init_linear_params(k_fc1, input_size, hidden_size)
    w2, b2 = init_linear_params(k_fc2, hidden_size, output_size)

    params = prepare_params(w1, b1, w2, b2)  # one-time cast/reshape, hoisted

    # --- small batch, forced through the Pallas kernel (min_pallas_batch=0) ---
    out = simple_nn_forward(x, *params, min_pallas_batch=0)
    jax.block_until_ready(out)
    assert out.shape == (batch, output_size)

    # Tight check vs. a reference using identical bf16 operands / f32 accumulation.
    ref_bf16 = _ref_forward_bf16(x, w1, b1, w2, b2)
    assert jnp.allclose(out, ref_bf16, atol=1e-3, rtol=1e-3)
    # Loose check vs. the full-f32 math of the PyTorch module.
    ref_f32 = jnp.maximum(x @ w1 + b1, 0.0) @ w2 + b2
    assert jnp.allclose(out, ref_f32, atol=3e-2, rtol=3e-2)

    # --- large non-multiple batch: exercises cdiv partial last block + 2-step
    #     grid (sharded across v7x's two TensorCores) ---
    big_batch = 600
    x_big = jax.random.normal(k_big, (big_batch, input_size), jnp.float32)
    out_big = simple_nn_forward(x_big, *params)  # B >= 256 -> Pallas path
    jax.block_until_ready(out_big)
    assert out_big.shape == (big_batch, output_size)
    ref_big = _ref_forward_bf16(x_big, w1, b1, w2, b2)
    assert jnp.allclose(out_big, ref_big, atol=1e-3, rtol=1e-3)

    # --- tiny-batch fast path (default threshold): same math, no pallas_call ---
    out_fast = simple_nn_forward(x, *params)
    jax.block_until_ready(out_fast)
    assert jnp.allclose(out_fast, out, atol=1e-3, rtol=1e-3)

    print("KERNEL_OK")
</pallas_src>

<mosaic_0001>
module attributes {stable_mosaic.version = 11 : i64} {
  func.func @mlp_kernel(%arg0: i32, %arg1: memref<8x32xf32, #tpu.memory_space<vmem>>, %arg2: memref<32x64xbf16, #tpu.memory_space<vmem>>, %arg3: memref<1x64xf32, #tpu.memory_space<vmem>>, %arg4: memref<64x16xbf16, #tpu.memory_space<vmem>>, %arg5: memref<1x16xf32, #tpu.memory_space<vmem>>, %arg6: memref<8x16xf32, #tpu.memory_space<vmem>>) attributes {dimension_semantics = [#tpu.dimension_semantics<parallel>], iteration_bounds = array<i64: 1>, scalar_prefetch = 0 : i64, scratch_operands = 0 : i64, tpu.core_type = #tpu.core_type<tc>, window_params = [{transform_indices = @transform_0, window_bounds = array<i64: 8, 32>}, {pipeline_mode = #tpu.pipeline_mode<synchronous>, transform_indices = @transform_1, window_bounds = array<i64: 32, 64>}, {pipeline_mode = #tpu.pipeline_mode<synchronous>, transform_indices = @transform_2, window_bounds = array<i64: 1, 64>}, {pipeline_mode = #tpu.pipeline_mode<synchronous>, transform_indices = @transform_3, window_bounds = array<i64: 64, 16>}, {pipeline_mode = #tpu.pipeline_mode<synchronous>, transform_indices = @transform_4, window_bounds = array<i64: 1, 16>}, {transform_indices = @transform_5, window_bounds = array<i64: 8, 16>}]} {
    %c0 = arith.constant 0 : index
    %c0_0 = arith.constant 0 : index
    %0 = vector.load %arg1[%c0, %c0_0] : memref<8x32xf32, #tpu.memory_space<vmem>>, vector<8x32xf32>
    %1 = arith.truncf %0 : vector<8x32xf32> to vector<8x32xbf16>
    %c0_1 = arith.constant 0 : index
    %c0_2 = arith.constant 0 : index
    %2 = vector.load %arg2[%c0_1, %c0_2] : memref<32x64xbf16, #tpu.memory_space<vmem>>, vector<32x64xbf16>
    %cst = arith.constant dense<0.000000e+00> : vector<8x64xf32>
    %3 = tpu.matmul %1, %2, %cst {dimension_numbers = #tpu.dot_dimension_numbers<[1], [0], [0], [1], [0, 0, 1, 1], [], []>} : vector<8x32xbf16>, vector<32x64xbf16>, vector<8x64xf32> -> vector<8x64xf32>
    %c0_3 = arith.constant 0 : index
    %c0_4 = arith.constant 0 : index
    %4 = vector.load %arg3[%c0_3, %c0_4] : memref<1x64xf32, #tpu.memory_space<vmem>>, vector<1x64xf32>
    %5 = vector.broadcast %4 : vector<1x64xf32> to vector<8x64xf32>
    %6 = arith.addf %3, %5 : vector<8x64xf32>
    %cst_5 = arith.constant 0.000000e+00 : f32
    %7 = vector.broadcast %cst_5 : f32 to vector<8x64xf32>
    %8 = arith.maximumf %6, %7 : vector<8x64xf32>
    %9 = arith.truncf %8 : vector<8x64xf32> to vector<8x64xbf16>
    %c0_6 = arith.constant 0 : index
    %c0_7 = arith.constant 0 : index
    %10 = vector.load %arg4[%c0_6, %c0_7] : memref<64x16xbf16, #tpu.memory_space<vmem>>, vector<64x16xbf16>
    %cst_8 = arith.constant dense<0.000000e+00> : vector<8x16xf32>
    %11 = tpu.matmul %9, %10, %cst_8 {dimension_numbers = #tpu.dot_dimension_numbers<[1], [0], [0], [1], [0, 0, 1, 1], [], []>} : vector<8x64xbf16>, vector<64x16xbf16>, vector<8x16xf32> -> vector<8x16xf32>
    %c0_9 = arith.constant 0 : index
    %c0_10 = arith.constant 0 : index
    %12 = vector.load %arg5[%c0_9, %c0_10] : memref<1x16xf32, #tpu.memory_space<vmem>>, vector<1x16xf32>
    %13 = vector.broadcast %12 : vector<1x16xf32> to vector<8x16xf32>
    %14 = arith.addf %11, %13 : vector<8x16xf32>
    %c0_11 = arith.constant 0 : index
    %c0_12 = arith.constant 0 : index
    %15 = vector.load %arg6[%c0_11, %c0_12] : memref<8x16xf32, #tpu.memory_space<vmem>>, vector<8x16xf32>
    tpu.vector_store %arg6[%c0_11, %c0_12], %14 {strides = array<i32>} : memref<8x16xf32, #tpu.memory_space<vmem>>, vector<8x16xf32>,
    return
  }
  func.func @transform_0(%arg0: i32) -> (i32, i32) {
    %c0_i32 = arith.constant 0 : i32
    %c0_i32_0 = arith.constant 0 : i32
    return %arg0, %c0_i32 : i32, i32
  }
  func.func @transform_1(%arg0: i32) -> (i32, i32) {
    %c0_i32 = arith.constant 0 : i32
    %c0_i32_0 = arith.constant 0 : i32
    %c0_i32_1 = arith.constant 0 : i32
    return %c0_i32, %c0_i32_0 : i32, i32
  }
  func.func @transform_2(%arg0: i32) -> (i32, i32) {
    %c0_i32 = arith.constant 0 : i32
    %c0_i32_0 = arith.constant 0 : i32
    %c0_i32_1 = arith.constant 0 : i32
    return %c0_i32, %c0_i32_0 : i32, i32
  }
  func.func @transform_3(%arg0: i32) -> (i32, i32) {
    %c0_i32 = arith.constant 0 : i32
    %c0_i32_0 = arith.constant 0 : i32
    %c0_i32_1 = arith.constant 0 : i32
    return %c0_i32, %c0_i32_0 : i32, i32
  }
  func.func @transform_4(%arg0: i32) -> (i32, i32) {
    %c0_i32 = arith.constant 0 : i32
    %c0_i32_0 = arith.constant 0 : i32
    %c0_i32_1 = arith.constant 0 : i32
    return %c0_i32, %c0_i32_0 : i32, i32
  }
  func.func @transform_5(%arg0: i32) -> (i32, i32) {
    %c0_i32 = arith.constant 0 : i32
    %c0_i32_0 = arith.constant 0 : i32
    return %arg0, %c0_i32 : i32, i32
  }
}

</mosaic_0001>

<llo_original>
// kernel: simple_nn_forward.1
$region0: #{simple_nn_forward.1}
  #allocation0 [shape = 'u32[]', space=smem, size = 0x4, offset = 0x4, fixed_abs, tag = 'smem constant byte address 0x4 - core index']
  #allocation1 [shape = 'u32[72,128]{1,0:T(1,128)}', space=vmem, size = 0x9000, scoped, tag = 'internal scratch']
  %s0 = inlined_call_operand.vmem [shape: f32[8,32], index: 0, kind: input, shape index: {}]
  %s1 = inlined_call_operand.vmem [shape: bf16[32,64], index: 1, kind: input, shape index: {}]
  %s2 = inlined_call_operand.vmem [shape: f32[1,64], index: 2, kind: input, shape index: {}]
  %s3 = inlined_call_operand.vmem [shape: bf16[64,16], index: 3, kind: input, shape index: {}]
  %s4 = inlined_call_operand.vmem [shape: f32[1,16], index: 4, kind: input, shape index: {}]
  %s5 = inlined_call_operand.hbm [shape: f32[8,16], index: 5, kind: output, shape index: {}]
  %s6 = sld [smem:[#allocation0]]
  $region30: #{simple_nn_forward.1} parent=0
    _
  %s8 = ssub.s32 1, %s6
  %s9 = scalar_select 0, %s8, %s6
  $region1: #{simple_nn_forward.1} parent=0
    #allocation2 [shape = 'u8[4096]{0}', space=vmem, size = 0x1000, scoped, tag = 'output window, operand 0, single buffered']
    #allocation3 [shape = 's32[1]{0}', space=sflag, size = 0x4, scoped, tag = 'scoped memory for simple_nn_forward.1']
    %10 = vsyncpa [#allocation3], 0
    // Predicated region
    $region2: #{simple_nn_forward.1} parent=1 // pred_check
      _
    $region3: #{simple_nn_forward.1} parent=1 // pred_check_branch
      %12 = sbr.rel (0) target = $region5
    $region4: #{simple_nn_forward.1} parent=1 // pred_region
      _
    $region5: #{simple_nn_forward.1} parent=1 // pred_fallthru
      _
    // Predicated region
    $region6: #{simple_nn_forward.1} parent=1 // pred_check
      _
    $region7: #{simple_nn_forward.1} parent=1 // pred_check_branch
      %14 = sbr.rel (0) target = $region9
    $region8: #{simple_nn_forward.1} parent=1 // pred_region
      _
    $region9: #{simple_nn_forward.1} parent=1 // pred_fallthru
      _
    // Predicated region
    $region10: #{simple_nn_forward.1} parent=1 // pred_check
      _
    $region11: #{simple_nn_forward.1} parent=1 // pred_check_branch
      %16 = sbr.rel (0) target = $region13
    $region12: #{simple_nn_forward.1} parent=1 // pred_region
      _
    $region13: #{simple_nn_forward.1} parent=1 // pred_fallthru
      _
    // Predicated region
    $region14: #{simple_nn_forward.1} parent=1 // pred_check
      _
    $region15: #{simple_nn_forward.1} parent=1 // pred_check_branch
      %18 = sbr.rel (0) target = $region17
    $region16: #{simple_nn_forward.1} parent=1 // pred_region
      _
    $region17: #{simple_nn_forward.1} parent=1 // pred_fallthru
      _
    // Predicated region
    $region18: #{simple_nn_forward.1} parent=1 // pred_check
      _
    $region19: #{simple_nn_forward.1} parent=1 // pred_check_branch
      %20 = sbr.rel (0) target = $region21
    $region20: #{simple_nn_forward.1} parent=1 // pred_region
      _
    $region21: #{simple_nn_forward.1} parent=1 // pred_fallthru
      _
    %v22 = vld [vmem:[%s0] sm:$0xff]
    %v23 = vpack.c.bf16 %v22, %v22
    %v24 = vld [vmem:[%s1] sm:$0xf]
    %v25 = vld [vmem:[%s1 + $0x4] sm:$0xf]
    %v26 = vld [vmem:[%s1 + $0x8] sm:$0xf]
    %v27 = vld [vmem:[%s1 + $0xc] sm:$0xf]
    %v28 = vld [vmem:[%s2] sm:$0x1]
    %v30 = vperm.slane %v28, 0
    %v36 = vunpack.c.l.b16 %v24
    %v37 = vunpack.c.l.b16 %v25
    %v38 = vunpack.c.l.b16 %v26
    %v39 = vunpack.c.l.b16 %v27
    %v40 = vpack.c.b16 %v37, %v36
    %v41 = vpack.c.b16 %v39, %v38
    %vm44 = vcmask 261120
    %v46 = vsel %vm44, %v23, 0
    %48 = vmatpush.bf16.msra.mxu0 0
    %49 = vmatpush.bf16.msra.mxu0 0
    %50 = vmatpush.bf16.msra.mxu0 0
    %51 = vmatpush.bf16.msra.mxu0 0
    %52 = vmatpush.bf16.msra.mxu0 0
    %53 = vmatpush.bf16.msra.mxu0 0
    %54 = vmatpush.bf16.msra.mxu0 %v41
    %55 = vmatpush.bf16.msra.mxu0 %v40
    %56 = vmatmul.bf16.gmra.mxu0 %v46
    %v57 = vpop.f32.mrf.mxu0
    %v58 = vadd.f32 %v30, %v57
    %v59 = vpop.f32.mrf.mxu0
    %60 = vdwg.mxu0
    %v61 = vmax.f32 %v58, 0.0
    %v62 = vpack.c.bf16 %v61, %v61
    %v63 = vld [vmem:[%s3] sm:$0xf]
    %v64 = vld [vmem:[%s3 + $0x4] sm:$0xf]
    %v65 = vld [vmem:[%s3 + $0x8] sm:$0xf]
    %v66 = vld [vmem:[%s3 + $0xc] sm:$0xf]
    %v67 = vld [vmem:[%s3 + $0x10] sm:$0xf]
    %v68 = vld [vmem:[%s3 + $0x14] sm:$0xf]
    %v69 = vld [vmem:[%s3 + $0x18] sm:$0xf]
    %v70 = vld [vmem:[%s3 + $0x1c] sm:$0xf]
    %v71 = vld [vmem:[%s4] sm:$0x1]
    %v73 = vperm.slane %v71, 0
    %v83 = vunpack.c.l.b16 %v63
    %v84 = vunpack.c.l.b16 %v64
    %v85 = vunpack.c.l.b16 %v65
    %v86 = vunpack.c.l.b16 %v66
    %v87 = vunpack.c.l.b16 %v67
    %v88 = vunpack.c.l.b16 %v68
    %v89 = vunpack.c.l.b16 %v69
    %v90 = vunpack.c.l.b16 %v70
    %v91 = vpack.c.b16 %v84, %v83
    %v92 = vpack.c.b16 %v86, %v85
    %v93 = vpack.c.b16 %v88, %v87
    %v94 = vpack.c.b16 %v90, %v89
    %vm99 = vcmask 523264
    %v101 = vsel %vm99, %v62, 0
    %103 = vmatpush.bf16.msra.mxu0 0
    %104 = vmatpush.bf16.msra.mxu0 0
    %105 = vmatpush.bf16.msra.mxu0 0
    %106 = vmatpush.bf16.msra.mxu0 0
    %107 = vmatpush.bf16.msra.mxu0 %v94
    %108 = vmatpush.bf16.msra.mxu0 %v93
    %109 = vmatpush.bf16.msra.mxu0 %v92
    %110 = vmatpush.bf16.msra.mxu0 %v91
    %111 = vmatmul.bf16.gmra.mxu0 %v101
    %v112 = vpop.f32.mrf.mxu0
    %v113 = vadd.f32 %v73, %v112
    %v114 = vpop.f32.mrf.mxu0
    %115 = vdwg.mxu0
    %vm116 = vcmask 130048
    %117 = vst.msk [vmem:[#allocation2] sm:$0xff] %vm116, %v113
    // Predicated region
    $region22: #{simple_nn_forward.1} parent=1 // pred_check
      _
    $region23: #{simple_nn_forward.1} parent=1 // pred_check_branch
      %119 = sbr.rel (0) target = $region25
    $region24: #{simple_nn_forward.1} parent=1 // pred_region
      %121 = vsyncadd [#allocation3], 0
      %s123 = sshll.u32 [#allocation2], 4
      %s124 = int_to_ptr.vmem [resolvable:$true] %s123
      %s125 = sshll.u32 %s5, 4
      %s126 = int_to_ptr.hbm [resolvable:$true] %s125
      %128 = dma.vmem_to_hbm [thread:$0]  %s124, 128, %s126, [#allocation3]
    $region25: #{simple_nn_forward.1} parent=1 // pred_fallthru
      _
    // Predicated region
    $region26: #{simple_nn_forward.1} parent=1 // pred_check
      _
    $region27: #{simple_nn_forward.1} parent=1 // pred_check_branch
      %130 = sbr.rel (0) target = $region29
    $region28: #{simple_nn_forward.1} parent=1 // pred_region
      %132 = dma.done [#allocation3], 128
    $region29: #{simple_nn_forward.1} parent=1 // pred_fallthru
      _
    %133 = vsyncpa [#allocation3], 1

</llo_original>
